<compile_context>
chip_gen: v5e
topology: v5e:2x2
jax: 0.10.0
libtpu: 0.0.40
codegen_flags: <defaults>
</compile_context>

<pallas_src>
import jax
import jax.numpy as jnp
from jax.experimental import pallas as pl
from jax.experimental.pallas import tpu as pltpu

_TILE_BYTES_TARGET = 6 * 1024 * 1024      # ~6 MiB tile; x4 (in+out, dbl-buffered) = 24 MiB
_SPLIT_THRESHOLD_BYTES = 4 * 1024 * 1024  # above this, force >= 4 grid tiles (v7x megacore)
_VMEM_LIMIT_BYTES = 48 * 1024 * 1024      # <= v7x 64 MiB physical; > v5e 16 MiB scoped default
_SUBLANE_PACK = 32                        # native sublane packing for f32/bf16/int8 alike


# ----------------------------------------------------------------------------
# Default path: zero-data-movement identity (output aliases the input buffer).
# ----------------------------------------------------------------------------
def _noop_kernel(x_ref, o_ref, flag_ref):
    # Output aliases the input HBM buffer; nothing to move.  The SMEM store
    # keeps the body non-trivial without touching any tensor data.
    del x_ref, o_ref
    flag_ref[0] = jnp.int32(1)


def _identity_noop(x):
    return pl.pallas_call(
        _noop_kernel,
        out_shape=jax.ShapeDtypeStruct(x.shape, x.dtype),
        in_specs=[pl.BlockSpec(memory_space=pl.ANY)],
        out_specs=pl.BlockSpec(memory_space=pl.ANY),
        scratch_shapes=[pltpu.SMEM((1,), jnp.int32)],
        input_output_aliases={0: 0},
        compiler_params=pltpu.CompilerParams(has_side_effects=True),
    )(x)


# ----------------------------------------------------------------------------
# Optional path: tuned streaming copy into a fresh buffer.
# ----------------------------------------------------------------------------
def _copy_kernel(x_ref, o_ref):
    o_ref[...] = x_ref[...]


def _choose_cols(total):
    """Widest multiple-of-128 column count dividing `total`, preferring one
    that also leaves >= 8 rows (native sublane count)."""
    best = None
    for cols in (2048, 1024, 512, 256, 128):
        if total % cols == 0:
            if best is None:
                best = cols
            if total // cols >= 8:
                return cols
    return best


def _choose_tile_rows(rows, cols, itemsize):
    """Row tile for the (rows, cols) flattened view: VMEM-budget capped,
    >= 4 grid steps for big tensors, multiple of 32 (then 8) rows."""
    row_bytes = cols * itemsize
    total_bytes = rows * row_bytes
    cap = _TILE_BYTES_TARGET // max(1, row_bytes)      # VMEM budget
    if total_bytes > _SPLIT_THRESHOLD_BYTES:           # keep both v7x TCs busy
        cap = min(cap, rows // 4)
    if cap >= rows:
        return rows                                    # single full-extent block
    if cap >= _SUBLANE_PACK:
        return (cap // _SUBLANE_PACK) * _SUBLANE_PACK
    if cap >= 8:
        return (cap // 8) * 8
    # Pathological aspect ratio (single rows wider than the tile budget):
    # 8 is the smallest legal non-full-extent row block.
    return rows if rows < 8 else 8


def _streaming_copy(x):
    orig_shape = x.shape
    total = x.size
    itemsize = jnp.dtype(x.dtype).itemsize

    cols = _choose_cols(total)
    if cols is None:
        # total not a multiple of 128: keep the original (full-extent) last
        # dim but still tile the rows -> never one giant VMEM block.
        cols = orig_shape[-1]
    rows = total // cols

    tile_rows = _choose_tile_rows(rows, cols, itemsize)
    grid = (pl.cdiv(rows, tile_rows),)   # ragged last block handled by Pallas

    x2 = x.reshape(rows, cols)
    out2 = pl.pallas_call(
        _copy_kernel,
        out_shape=jax.ShapeDtypeStruct((rows, cols), x.dtype),
        grid=grid,
        in_specs=[pl.BlockSpec((tile_rows, cols), lambda i: (i, 0))],
        out_specs=pl.BlockSpec((tile_rows, cols), lambda i: (i, 0)),
        compiler_params=pltpu.CompilerParams(
            dimension_semantics=("parallel",),   # shards tiles across v7x's 2 TCs
            vmem_limit_bytes=_VMEM_LIMIT_BYTES,
        ),
    )(x2)
    return out2.reshape(orig_shape)


# ----------------------------------------------------------------------------
# Public wrapper: PrintLayer.forward
# ----------------------------------------------------------------------------
def print_layer(x, name="default", index="NaN", materialize=False):
    """Pallas implementation of PrintLayer.forward: print size, return x."""
    # Reproduce the PyTorch print side effect (shape is static).
    print(f"\n{name} layer {index} output size : {tuple(x.shape)}")

    x = jnp.asarray(x)
    if x.ndim == 0 or x.size == 0:
        return x                   # degenerate: nothing for a kernel to do

    if not materialize:
        return _identity_noop(x)   # zero data movement, aliased output
    return _streaming_copy(x)      # tuned HBM-roofline copy into a new buffer


if __name__ == "__main__":
    key = jax.random.PRNGKey(0)
    # Small NCHW input consistent with a DenseNet feature map.
    x = jax.random.normal(key, (2, 4, 16, 16), dtype=jnp.float32)

    # Default path: zero-data-movement identity.
    y = jax.block_until_ready(print_layer(x, name="dense", index=1))
    assert y.shape == x.shape and y.dtype == x.dtype
    assert bool(jnp.all(y == x))

    # Materializing path: lane-dense tiled streaming copy.
    y2 = jax.block_until_ready(print_layer(x, name="dense", index=2, materialize=True))
    assert y2.shape == x.shape and y2.dtype == x.dtype
    assert bool(jnp.all(y2 == x))

    # Non-multiple-of-128 fallback (full-extent last dim, rows still tiled).
    x_odd = jax.random.normal(key, (2, 3, 5, 7), dtype=jnp.float32)
    y3 = jax.block_until_ready(print_layer(x_odd, name="dense", index=3, materialize=True))
    assert y3.shape == x_odd.shape and y3.dtype == x_odd.dtype
    assert bool(jnp.all(y3 == x_odd))

    print("KERNEL_OK")
</pallas_src>

<mosaic_0001>
module attributes {stable_mosaic.version = 11 : i64} {
  func.func @_noop_kernel(%arg0: memref<2x4x16x16xf32, #tpu.memory_space<any>>, %arg1: memref<2x4x16x16xf32, #tpu.memory_space<any>>, %arg2: memref<1xi32, #tpu.memory_space<smem>>) attributes {dimension_semantics = [], scalar_prefetch = 0 : i64, scratch_operands = 1 : i64, tpu.core_type = #tpu.core_type<tc>} {
    %c1_i32 = arith.constant 1 : i32
    %c0 = arith.constant 0 : index
    %0 = memref.load %arg2[%c0] : memref<1xi32, #tpu.memory_space<smem>>
    memref.store %c1_i32, %arg2[%c0] : memref<1xi32, #tpu.memory_space<smem>>
    return
  }
}

</mosaic_0001>

<llo_original>
// kernel: tpu_custom_call.1
$region0: #{tpu_custom_call.1}
  #allocation0 [shape = 'u32[]', space=smem, size = 0x4, offset = 0x4, fixed_abs, tag = 'smem constant byte address 0x4 - core index']
  #allocation1 [shape = 'u32[72,128]{1,0:T(1,128)}', space=vmem, size = 0x9000, scoped, tag = 'internal scratch']
  #allocation2 [shape = 's32[1]{0:T(128)}', space=smem, size = 0x200, scoped, tag = 'scratch operand']
  %s0 = inlined_call_operand.hbm [shape: f32[2,4,16,16], index: 0, kind: input, shape index: {}, may-alias: {0,1}]
  %s1 = inlined_call_operand.hbm [shape: f32[2,4,16,16], index: 1, kind: output, shape index: {}, may-alias: {0,1}]
  %s2 = sld [smem:[#allocation0]]
  $region2: #{tpu_custom_call.1} parent=0
    _
  %s4 = ssub.s32 1, %s2
  %s5 = scalar_select 0, %s4, %s2
  %s6 = scalar_lea.smem [#allocation2], 0
  %7 = sst [smem:[%s6]] 1

</llo_original>
